<compile_context>
chip_gen: v7x
topology: tpu7x:2x2x1
jax: 0.10.0
libtpu: 0.0.40
codegen_flags: <defaults>
</compile_context>

<pallas_src>
import math

import jax
import jax.numpy as jnp
from jax.experimental import pallas as pl
from jax.experimental.pallas import tpu as pltpu


_LANE = 128          # vreg lane width / MXU column tile
_BF16_SUBLANE = 16   # sublane packing for bf16 second-minor dim


def _round_up(x, m):
    return ((x + m - 1) // m) * m


def _device_kind():
    try:
        return jax.devices()[0].device_kind.lower()
    except Exception:
        return ""


def _default_tile_b():
    kind = _device_kind()
    if "v6" in kind:
        return 512   # 128 MiB VMEM + 256-wide MXU: large M amortizes weight streaming
    return 256       # v5e (overhead/MXU-bound) and v7x (64 MiB per-TC VMEM)


def _vmem_capacity_bytes():
    try:
        cap = int(pltpu.get_tpu_info().vmem_capacity_bytes)
        if cap > 0:
            return cap
    except Exception:
        pass
    kind = _device_kind()
    return (64 if "v7" in kind else 128) * 2**20


def _const_spec(shape):
    """BlockSpec for a grid-invariant block: single-buffered when supported."""
    index_map = lambda i: (0, 0)
    try:
        return pl.BlockSpec(shape, index_map, pipeline_mode=pl.Buffered(1))
    except TypeError:  # older Pallas without pipeline_mode support
        return pl.BlockSpec(shape, index_map)


def _make_fcn_kernel(n_layers):
    """Fused MLP: h = LeakyReLU_{0.2}(h @ W_i + b_i) for every layer.

    refs = [x_ref, w0, b0, w1, b1, ..., w_{L-1}, b_{L-1}, o_ref]
    """

    def kernel(*refs):
        x_ref = refs[0]
        o_ref = refs[-1]
        # f32 (or bf16) input -> bf16 for the MXU; cast hides under MXU/VPU slack.
        h = x_ref[...].astype(jnp.bfloat16)                # (TILE_B, in_p)
        for i in range(n_layers):
            w = refs[1 + 2 * i][...]                       # bf16 (in_p, out_p)
            b = refs[2 + 2 * i][...]                       # f32  (1, out_p)
            acc = jnp.dot(h, w, preferred_element_type=jnp.float32) + b
            act = jnp.maximum(acc, 0.2 * acc)              # LeakyReLU(0.2), VPU f32
            if i + 1 < n_layers:
                h = act.astype(jnp.bfloat16)
            else:
                o_ref[...] = act.astype(o_ref.dtype)

    return kernel


def linear_fcn_forward(batch, weights, biases, *, tile_b=None,
                       out_dtype=jnp.float32):
    """Forward pass of LinearFCN with compose_mode='concat', mode='regression'.

    batch:   (B, 3, vector_size)
    weights: list of (in_i, out_i) arrays (transposed vs. PyTorch nn.Linear)
    biases:  list of (out_i,) arrays
    returns: (B, out_last) in `out_dtype`
    """
    B = batch.shape[0]
    # TripleComposition('concat'): view(-1, n_input * vector_size)
    x = batch.reshape(B, -1)
    in_dim = x.shape[1]
    n_layers = len(weights)
    out_dim = weights[-1].shape[1]

    # Lane-pad every feature dim to a multiple of 128.
    dims = [in_dim] + [w.shape[1] for w in weights]
    dims_p = [_round_up(d, _LANE) for d in dims]
    in_p, out_p = dims_p[0], dims_p[-1]

    # --- Batch tiling -------------------------------------------------------
    if tile_b is None:
        tile_b = _default_tile_b()
    tile_b = _round_up(max(int(tile_b), _BF16_SUBLANE), _BF16_SUBLANE)
    tile = _round_up(min(tile_b, _round_up(max(B, 1), _BF16_SUBLANE)),
                     _BF16_SUBLANE)
    # Guarantee >= 2 grid steps when B allows it, so v7x's two TensorCores both
    # get work under dimension_semantics=("parallel",).
    if _round_up(B, tile) // tile < 2 and B >= 2 * _BF16_SUBLANE:
        tile = _round_up(-(-B // 2), _BF16_SUBLANE)

    # --- VMEM budget (honest accounting, single-buffered params) ------------
    param_bytes = 0
    for li in range(n_layers):
        param_bytes += dims_p[li] * dims_p[li + 1] * 2      # bf16 weights
        param_bytes += dims_p[li + 1] * 4                   # f32 bias row

    out_itemsize = jnp.dtype(out_dtype).itemsize
    vmem_cap = _vmem_capacity_bytes()
    budget = int(0.85 * vmem_cap)                           # headroom for Mosaic scratch

    def _needed_bytes(t, x_itemsize, x_cols):
        live_act = t * max(dims_p) * 4                      # f32 activations in flight
        return (param_bytes                                 # Buffered(1): one copy
                + 2 * t * x_cols * x_itemsize               # double-buffered x tiles
                + 2 * t * out_p * out_itemsize              # double-buffered out tiles
                + 3 * live_act)                             # acc + headroom

    # Shrink the batch tile if the conservative (f32-input) estimate overflows.
    while tile > _BF16_SUBLANE and _needed_bytes(tile, 4, in_p) > budget:
        tile = max(_BF16_SUBLANE, _round_up(tile // 2, _BF16_SUBLANE))

    padded_b = _round_up(B, tile)
    grid = (padded_b // tile,)

    # --- Input handling: skip the wrapper pad/cast pass when already aligned -
    pad_cols = (in_dim % _LANE) != 0
    need_pad = pad_cols or (B % tile) != 0
    if need_pad:
        # Zero-pad (padded K columns MUST be zero; 0 * garbage could be NaN).
        x_in = jnp.zeros((padded_b, in_p), jnp.bfloat16).at[:B, :in_dim].set(
            x.astype(jnp.bfloat16))
        x_cols, x_itemsize = in_p, 2
    else:
        x_in = x                       # straight from HBM; cast to bf16 in-kernel
        x_cols, x_itemsize = in_dim, x.dtype.itemsize

    needed = _needed_bytes(tile, x_itemsize, x_cols)
    vmem_limit = int(min(budget, max(needed + (8 << 20), 32 << 20)))

    # --- Build args / specs --------------------------------------------------
    args = [x_in]
    in_specs = [pl.BlockSpec((tile, x_cols), lambda i: (i, 0))]
    for li, (w, b) in enumerate(zip(weights, biases)):
        fi, fo = w.shape
        fi_p, fo_p = dims_p[li], dims_p[li + 1]
        w_p = jnp.zeros((fi_p, fo_p), jnp.bfloat16).at[:fi, :fo].set(
            w.astype(jnp.bfloat16))
        b_p = jnp.zeros((1, fo_p), jnp.float32).at[0, :fo].set(
            b.astype(jnp.float32))
        args += [w_p, b_p]
        # Constant block index + Buffered(1) => params stay VMEM-resident,
        # single-buffered, across all batch tiles.
        in_specs += [_const_spec((fi_p, fo_p)), _const_spec((1, fo_p))]

    # Advisory cost estimate for XLA's scheduler.
    flops = int(2 * padded_b * sum(a * c for a, c in zip(dims_p[:-1], dims_p[1:])))
    bytes_accessed = int(x_in.size * x_in.dtype.itemsize + param_bytes
                         + padded_b * out_p * out_itemsize)

    kernel = _make_fcn_kernel(n_layers)
    out_padded = pl.pallas_call(
        kernel,
        out_shape=jax.ShapeDtypeStruct((padded_b, out_p), out_dtype),
        grid=grid,
        in_specs=in_specs,
        out_specs=pl.BlockSpec((tile, out_p), lambda i: (i, 0)),
        compiler_params=pltpu.CompilerParams(
            dimension_semantics=("parallel",),
            vmem_limit_bytes=vmem_limit),
        cost_estimate=pl.CostEstimate(
            flops=flops, transcendentals=0, bytes_accessed=bytes_accessed),
    )(*args)

    # Drop batch padding rows and lane padding columns.
    return out_padded[:B, :out_dim]


def init_linear_fcn_params(key, layers_size, vector_size, output_n,
                           mode="regression", compose_mode="concat"):
    """Deterministic parameter init mimicking nn.Linear's default uniform init."""
    layers_size = list(layers_size)
    input_n = 3 if compose_mode == "concat" else 1
    input_size = input_n * vector_size
    output_size = output_n * vector_size
    if mode == "regression":
        layers_size.append(output_size)
    elif mode == "classification":
        layers_size.append(output_n)
    dims = [input_size] + layers_size

    weights, biases = [], []
    for i in range(len(dims) - 1):
        fan_in, fan_out = dims[i], dims[i + 1]
        key, kw, kb = jax.random.split(key, 3)
        bound = 1.0 / math.sqrt(fan_in)
        # stored as (in, out) = transpose of PyTorch's (out, in)
        w = jax.random.uniform(kw, (fan_in, fan_out), jnp.float32, -bound, bound)
        b = jax.random.uniform(kb, (fan_out,), jnp.float32, -bound, bound)
        weights.append(w)
        biases.append(b)
    return weights, biases, input_size, dims


if __name__ == "__main__":
    def reference(x, weights, biases):
        # Pure-JAX reference mirroring kernel precision:
        # bf16 matmul inputs, f32 accumulation, f32 bias + LeakyReLU(0.2) every layer
        # (including the last, as in the PyTorch regression forward()).
        h = x.reshape(x.shape[0], -1)
        for w, b in zip(weights, biases):
            h = jnp.dot(h.astype(jnp.bfloat16), w.astype(jnp.bfloat16),
                        preferred_element_type=jnp.float32) + b
            h = jnp.maximum(h, 0.2 * h)
        return h

    key = jax.random.PRNGKey(0)

    # Case 1: tiny, lane-unaligned config — exercises the zero-pad path.
    key, pkey, xkey = jax.random.split(key, 3)
    w1, b1, in1, dims1 = init_linear_fcn_params(
        pkey, [64, 64, 64], vector_size=32, output_n=1)
    x1 = jax.random.normal(xkey, (4, 3, 32), jnp.float32)   # (B, n_input=3, vec)
    out1 = jax.block_until_ready(linear_fcn_forward(x1, w1, b1))
    ref1 = reference(x1, w1, b1)
    assert out1.shape == (4, dims1[-1]), out1.shape
    err1 = float(jnp.max(jnp.abs(out1 - ref1)))
    assert jnp.allclose(out1, ref1, atol=1e-2, rtol=1e-2), err1

    # Case 2: lane-aligned input & tile-multiple batch — exercises the no-pad
    # fast path (x passed unpadded, cast in-kernel) and the >=2-grid-step split.
    key, pkey, xkey = jax.random.split(key, 3)
    w2, b2, in2, dims2 = init_linear_fcn_params(
        pkey, [64, 64], vector_size=128, output_n=1)
    x2 = jax.random.normal(xkey, (32, 3, 128), jnp.float32)
    out2 = jax.block_until_ready(linear_fcn_forward(x2, w2, b2))
    ref2 = reference(x2, w2, b2)
    assert out2.shape == (32, dims2[-1]), out2.shape
    err2 = float(jnp.max(jnp.abs(out2 - ref2)))
    assert jnp.allclose(out2, ref2, atol=1e-2, rtol=1e-2), err2

    print("KERNEL_OK")
</pallas_src>

<mosaic_0001>
module attributes {stable_mosaic.version = 11 : i64} {
  func.func @kernel(%arg0: i32, %arg1: memref<16x128xbf16, #tpu.memory_space<vmem>>, %arg2: memref<128x128xbf16, #tpu.memory_space<vmem>>, %arg3: memref<1x128xf32, #tpu.memory_space<vmem>>, %arg4: memref<128x128xbf16, #tpu.memory_space<vmem>>, %arg5: memref<1x128xf32, #tpu.memory_space<vmem>>, %arg6: memref<128x128xbf16, #tpu.memory_space<vmem>>, %arg7: memref<1x128xf32, #tpu.memory_space<vmem>>, %arg8: memref<128x128xbf16, #tpu.memory_space<vmem>>, %arg9: memref<1x128xf32, #tpu.memory_space<vmem>>, %arg10: memref<16x128xf32, #tpu.memory_space<vmem>>) attributes {dimension_semantics = [#tpu.dimension_semantics<parallel>], iteration_bounds = array<i64: 1>, scalar_prefetch = 0 : i64, scratch_operands = 0 : i64, tpu.core_type = #tpu.core_type<tc>, window_params = [{transform_indices = @transform_0, window_bounds = array<i64: 16, 128>}, {pipeline_mode = #tpu.pipeline_mode<synchronous>, transform_indices = @transform_1, window_bounds = array<i64: 128, 128>}, {pipeline_mode = #tpu.pipeline_mode<synchronous>, transform_indices = @transform_2, window_bounds = array<i64: 1, 128>}, {pipeline_mode = #tpu.pipeline_mode<synchronous>, transform_indices = @transform_3, window_bounds = array<i64: 128, 128>}, {pipeline_mode = #tpu.pipeline_mode<synchronous>, transform_indices = @transform_4, window_bounds = array<i64: 1, 128>}, {pipeline_mode = #tpu.pipeline_mode<synchronous>, transform_indices = @transform_5, window_bounds = array<i64: 128, 128>}, {pipeline_mode = #tpu.pipeline_mode<synchronous>, transform_indices = @transform_6, window_bounds = array<i64: 1, 128>}, {pipeline_mode = #tpu.pipeline_mode<synchronous>, transform_indices = @transform_7, window_bounds = array<i64: 128, 128>}, {pipeline_mode = #tpu.pipeline_mode<synchronous>, transform_indices = @transform_8, window_bounds = array<i64: 1, 128>}, {transform_indices = @transform_9, window_bounds = array<i64: 16, 128>}]} {
    %c0 = arith.constant 0 : index
    %c0_0 = arith.constant 0 : index
    %0 = vector.load %arg1[%c0, %c0_0] : memref<16x128xbf16, #tpu.memory_space<vmem>>, vector<16x128xbf16>
    %c0_1 = arith.constant 0 : index
    %c0_2 = arith.constant 0 : index
    %1 = vector.load %arg2[%c0_1, %c0_2] : memref<128x128xbf16, #tpu.memory_space<vmem>>, vector<128x128xbf16>
    %c0_3 = arith.constant 0 : index
    %c0_4 = arith.constant 0 : index
    %2 = vector.load %arg3[%c0_3, %c0_4] : memref<1x128xf32, #tpu.memory_space<vmem>>, vector<1x128xf32>
    %cst = arith.constant dense<0.000000e+00> : vector<16x128xf32>
    %3 = tpu.matmul %0, %1, %cst {dimension_numbers = #tpu.dot_dimension_numbers<[1], [0], [0], [1], [0, 0, 1, 1], [], []>} : vector<16x128xbf16>, vector<128x128xbf16>, vector<16x128xf32> -> vector<16x128xf32>
    %4 = vector.broadcast %2 : vector<1x128xf32> to vector<16x128xf32>
    %5 = arith.addf %3, %4 : vector<16x128xf32>
    %cst_5 = arith.constant 2.000000e-01 : f32
    %6 = vector.broadcast %cst_5 : f32 to vector<16x128xf32>
    %7 = arith.mulf %6, %5 : vector<16x128xf32>
    %8 = arith.maximumf %5, %7 : vector<16x128xf32>
    %9 = arith.truncf %8 : vector<16x128xf32> to vector<16x128xbf16>
    %c0_6 = arith.constant 0 : index
    %c0_7 = arith.constant 0 : index
    %10 = vector.load %arg4[%c0_6, %c0_7] : memref<128x128xbf16, #tpu.memory_space<vmem>>, vector<128x128xbf16>
    %c0_8 = arith.constant 0 : index
    %c0_9 = arith.constant 0 : index
    %11 = vector.load %arg5[%c0_8, %c0_9] : memref<1x128xf32, #tpu.memory_space<vmem>>, vector<1x128xf32>
    %cst_10 = arith.constant dense<0.000000e+00> : vector<16x128xf32>
    %12 = tpu.matmul %9, %10, %cst_10 {dimension_numbers = #tpu.dot_dimension_numbers<[1], [0], [0], [1], [0, 0, 1, 1], [], []>} : vector<16x128xbf16>, vector<128x128xbf16>, vector<16x128xf32> -> vector<16x128xf32>
    %13 = vector.broadcast %11 : vector<1x128xf32> to vector<16x128xf32>
    %14 = arith.addf %12, %13 : vector<16x128xf32>
    %cst_11 = arith.constant 2.000000e-01 : f32
    %15 = vector.broadcast %cst_11 : f32 to vector<16x128xf32>
    %16 = arith.mulf %15, %14 : vector<16x128xf32>
    %17 = arith.maximumf %14, %16 : vector<16x128xf32>
    %18 = arith.truncf %17 : vector<16x128xf32> to vector<16x128xbf16>
    %c0_12 = arith.constant 0 : index
    %c0_13 = arith.constant 0 : index
    %19 = vector.load %arg6[%c0_12, %c0_13] : memref<128x128xbf16, #tpu.memory_space<vmem>>, vector<128x128xbf16>
    %c0_14 = arith.constant 0 : index
    %c0_15 = arith.constant 0 : index
    %20 = vector.load %arg7[%c0_14, %c0_15] : memref<1x128xf32, #tpu.memory_space<vmem>>, vector<1x128xf32>
    %cst_16 = arith.constant dense<0.000000e+00> : vector<16x128xf32>
    %21 = tpu.matmul %18, %19, %cst_16 {dimension_numbers = #tpu.dot_dimension_numbers<[1], [0], [0], [1], [0, 0, 1, 1], [], []>} : vector<16x128xbf16>, vector<128x128xbf16>, vector<16x128xf32> -> vector<16x128xf32>
    %22 = vector.broadcast %20 : vector<1x128xf32> to vector<16x128xf32>
    %23 = arith.addf %21, %22 : vector<16x128xf32>
    %cst_17 = arith.constant 2.000000e-01 : f32
    %24 = vector.broadcast %cst_17 : f32 to vector<16x128xf32>
    %25 = arith.mulf %24, %23 : vector<16x128xf32>
    %26 = arith.maximumf %23, %25 : vector<16x128xf32>
    %27 = arith.truncf %26 : vector<16x128xf32> to vector<16x128xbf16>
    %c0_18 = arith.constant 0 : index
    %c0_19 = arith.constant 0 : index
    %28 = vector.load %arg8[%c0_18, %c0_19] : memref<128x128xbf16, #tpu.memory_space<vmem>>, vector<128x128xbf16>
    %c0_20 = arith.constant 0 : index
    %c0_21 = arith.constant 0 : index
    %29 = vector.load %arg9[%c0_20, %c0_21] : memref<1x128xf32, #tpu.memory_space<vmem>>, vector<1x128xf32>
    %cst_22 = arith.constant dense<0.000000e+00> : vector<16x128xf32>
    %30 = tpu.matmul %27, %28, %cst_22 {dimension_numbers = #tpu.dot_dimension_numbers<[1], [0], [0], [1], [0, 0, 1, 1], [], []>} : vector<16x128xbf16>, vector<128x128xbf16>, vector<16x128xf32> -> vector<16x128xf32>
    %31 = vector.broadcast %29 : vector<1x128xf32> to vector<16x128xf32>
    %32 = arith.addf %30, %31 : vector<16x128xf32>
    %cst_23 = arith.constant 2.000000e-01 : f32
    %33 = vector.broadcast %cst_23 : f32 to vector<16x128xf32>
    %34 = arith.mulf %33, %32 : vector<16x128xf32>
    %35 = arith.maximumf %32, %34 : vector<16x128xf32>
    %c0_24 = arith.constant 0 : index
    %c0_25 = arith.constant 0 : index
    %36 = vector.load %arg10[%c0_24, %c0_25] : memref<16x128xf32, #tpu.memory_space<vmem>>, vector<16x128xf32>
    tpu.vector_store %arg10[%c0_24, %c0_25], %35 {strides = array<i32>} : memref<16x128xf32, #tpu.memory_space<vmem>>, vector<16x128xf32>,
    return
  }
  func.func @transform_0(%arg0: i32) -> (i32, i32) {
    %c0_i32 = arith.constant 0 : i32
    %c0_i32_0 = arith.constant 0 : i32
    return %arg0, %c0_i32 : i32, i32
  }
  func.func @transform_1(%arg0: i32) -> (i32, i32) {
    %c0_i32 = arith.constant 0 : i32
    %c0_i32_0 = arith.constant 0 : i32
    %c0_i32_1 = arith.constant 0 : i32
    return %c0_i32, %c0_i32_0 : i32, i32
  }
  func.func @transform_2(%arg0: i32) -> (i32, i32) {
    %c0_i32 = arith.constant 0 : i32
    %c0_i32_0 = arith.constant 0 : i32
    %c0_i32_1 = arith.constant 0 : i32
    return %c0_i32, %c0_i32_0 : i32, i32
  }
  func.func @transform_3(%arg0: i32) -> (i32, i32) {
    %c0_i32 = arith.constant 0 : i32
    %c0_i32_0 = arith.constant 0 : i32
    %c0_i32_1 = arith.constant 0 : i32
    return %c0_i32, %c0_i32_0 : i32, i32
  }
  func.func @transform_4(%arg0: i32) -> (i32, i32) {
    %c0_i32 = arith.constant 0 : i32
    %c0_i32_0 = arith.constant 0 : i32
    %c0_i32_1 = arith.constant 0 : i32
    return %c0_i32, %c0_i32_0 : i32, i32
  }
  func.func @transform_5(%arg0: i32) -> (i32, i32) {
    %c0_i32 = arith.constant 0 : i32
    %c0_i32_0 = arith.constant 0 : i32
    %c0_i32_1 = arith.constant 0 : i32
    return %c0_i32, %c0_i32_0 : i32, i32
  }
  func.func @transform_6(%arg0: i32) -> (i32, i32) {
    %c0_i32 = arith.constant 0 : i32
    %c0_i32_0 = arith.constant 0 : i32
    %c0_i32_1 = arith.constant 0 : i32
    return %c0_i32, %c0_i32_0 : i32, i32
  }
  func.func @transform_7(%arg0: i32) -> (i32, i32) {
    %c0_i32 = arith.constant 0 : i32
    %c0_i32_0 = arith.constant 0 : i32
    %c0_i32_1 = arith.constant 0 : i32
    return %c0_i32, %c0_i32_0 : i32, i32
  }
  func.func @transform_8(%arg0: i32) -> (i32, i32) {
    %c0_i32 = arith.constant 0 : i32
    %c0_i32_0 = arith.constant 0 : i32
    %c0_i32_1 = arith.constant 0 : i32
    return %c0_i32, %c0_i32_0 : i32, i32
  }
  func.func @transform_9(%arg0: i32) -> (i32, i32) {
    %c0_i32 = arith.constant 0 : i32
    %c0_i32_0 = arith.constant 0 : i32
    return %arg0, %c0_i32 : i32, i32
  }
}

</mosaic_0001>

<llo_original>
// kernel: tpu_custom_call.1
$region0: #{tpu_custom_call.1}
  #allocation0 [shape = 'u32[]', space=smem, size = 0x4, offset = 0x4, fixed_abs, tag = 'smem constant byte address 0x4 - core index']
  #allocation1 [shape = 'u32[144,128]{1,0:T(1,128)}', space=vmem, size = 0x12000, scoped, tag = 'internal scratch']
  %s0 = inlined_call_operand.hbm [shape: bf16[16,128], index: 0, kind: input, shape index: {}]
  %s1 = inlined_call_operand.hbm [shape: bf16[128,128], index: 1, kind: input, shape index: {}]
  %s2 = inlined_call_operand.vmem [shape: f32[1,128], index: 2, kind: input, shape index: {}]
  %s3 = inlined_call_operand.hbm [shape: bf16[128,128], index: 3, kind: input, shape index: {}]
  %s4 = inlined_call_operand.vmem [shape: f32[1,128], index: 4, kind: input, shape index: {}]
  %s5 = inlined_call_operand.hbm [shape: bf16[128,128], index: 5, kind: input, shape index: {}]
  %s6 = inlined_call_operand.vmem [shape: f32[1,128], index: 6, kind: input, shape index: {}]
  %s7 = inlined_call_operand.hbm [shape: bf16[128,128], index: 7, kind: input, shape index: {}]
  %s8 = inlined_call_operand.vmem [shape: f32[1,128], index: 8, kind: input, shape index: {}]
  %s9 = inlined_call_operand.hbm [shape: f32[16,128], index: 9, kind: output, shape index: {}]
  %s10 = sld [smem:[#allocation0]]
  $region66: #{tpu_custom_call.1} parent=0
    _
  %s12 = ssub.s32 1, %s10
  %s13 = scalar_select 0, %s12, %s10
  $region1: #{tpu_custom_call.1} parent=0
    #allocation2 [shape = 'u8[4096]{0}', space=vmem, size = 0x1000, scoped, tag = 'input window, operand 0, single buffered']
    #allocation3 [shape = 's32[1]{0}', space=sflag, size = 0x4, scoped, tag = 'scoped memory for tpu_custom_call.1']
    #allocation4 [shape = 's32[1]{0}', space=sflag, size = 0x4, scoped, tag = 'scoped memory for tpu_custom_call.1']
    #allocation5 [shape = 'u8[32768]{0}', space=vmem, size = 0x8000, scoped, tag = 'input window, operand 1, single buffered']
    #allocation6 [shape = 's32[1]{0}', space=sflag, size = 0x4, scoped, tag = 'scoped memory for tpu_custom_call.1']
    #allocation7 [shape = 'u8[32768]{0}', space=vmem, size = 0x8000, scoped, tag = 'input window, operand 3, single buffered']
    #allocation8 [shape = 'u8[32768]{0}', space=vmem, size = 0x8000, scoped, tag = 'input window, operand 5, single buffered']
    #allocation9 [shape = 's32[1]{0}', space=sflag, size = 0x4, scoped, tag = 'scoped memory for tpu_custom_call.1']
    #allocation10 [shape = 'u8[32768]{0}', space=vmem, size = 0x8000, scoped, tag = 'input window, operand 7, single buffered']
    #allocation11 [shape = 'u8[8192]{0}', space=vmem, size = 0x2000, scoped, tag = 'output window, operand 0, single buffered']
    %14 = vsyncpa [#allocation3], 0
    %15 = vsyncpa [#allocation6], 0
    %16 = vsyncpa [#allocation9], 0
    %17 = vsyncpa [#allocation4], 0
    // Predicated region
    $region2: #{tpu_custom_call.1} parent=1 // pred_check
      _
    $region3: #{tpu_custom_call.1} parent=1 // pred_check_branch
      %19 = sbr.rel (0) target = $region5
    $region4: #{tpu_custom_call.1} parent=1 // pred_region
      %s21 = ssub.s32 128, 128
      %22 = vsyncadd [#allocation3], %s21
      %s23 = sshll.u32 [#allocation2], 4
      %s24 = int_to_ptr.vmem [resolvable:$true] %s23
      %29 = dma.hbm_to_vmem [thread:$0]  %s0, 128, %s24, [#allocation3], 64, 64, 4
    $region5: #{tpu_custom_call.1} parent=1 // pred_fallthru
      _
    // Predicated region
    $region6: #{tpu_custom_call.1} parent=1 // pred_check
      _
    $region7: #{tpu_custom_call.1} parent=1 // pred_check_branch
      %31 = sbr.rel (0) target = $region9
    $region8: #{tpu_custom_call.1} parent=1 // pred_region
      %s33 = ssub.s32 1024, 1024
      %34 = vsyncadd [#allocation6], %s33
      %s35 = sshll.u32 [#allocation5], 4
      %s36 = int_to_ptr.vmem [resolvable:$true] %s35
      %41 = dma.hbm_to_vmem [thread:$0]  %s1, 1024, %s36, [#allocation6], 64, 64, 4
    $region9: #{tpu_custom_call.1} parent=1 // pred_fallthru
      _
    // Predicated region
    $region10: #{tpu_custom_call.1} parent=1 // pred_check
      _
    $region11: #{tpu_custom_call.1} parent=1 // pred_check_branch
      %43 = sbr.rel (0) target = $region13
    $region12: #{tpu_custom_call.1} parent=1 // pred_region
      _
    $region13: #{tpu_custom_call.1} parent=1 // pred_fallthru
      _
    // Predicated region
    $region14: #{tpu_custom_call.1} parent=1 // pred_check
      _
    $region15: #{tpu_custom_call.1} parent=1 // pred_check_branch
      %45 = sbr.rel (0) target = $region17
    $region16: #{tpu_custom_call.1} parent=1 // pred_region
      %s47 = ssub.s32 1024, 1024
      %48 = vsyncadd [#allocation6], %s47
      %s49 = sshll.u32 [#allocation7], 4
      %s50 = int_to_ptr.vmem [resolvable:$true] %s49
      %55 = dma.hbm_to_vmem [thread:$0]  %s3, 1024, %s50, [#allocation6], 64, 64, 4
    $region17: #{tpu_custom_call.1} parent=1 // pred_fallthru
      _
    // Predicated region
    $region18: #{tpu_custom_call.1} parent=1 // pred_check
      _
    $region19: #{tpu_custom_call.1} parent=1 // pred_check_branch
      %57 = sbr.rel (0) target = $region21
    $region20: #{tpu_custom_call.1} parent=1 // pred_region
      _
    $region21: #{tpu_custom_call.1} parent=1 // pred_fallthru
      _
    // Predicated region
    $region22: #{tpu_custom_call.1} parent=1 // pred_check
      _
    $region23: #{tpu_custom_call.1} parent=1 // pred_check_branch
      %59 = sbr.rel (0) target = $region25
    $region24: #{tpu_custom_call.1} parent=1 // pred_region
      %s61 = ssub.s32 1024, 1024
      %62 = vsyncadd [#allocation9], %s61
      %s63 = sshll.u32 [#allocation8], 4
      %s64 = int_to_ptr.vmem [resolvable:$true] %s63
      %69 = dma.hbm_to_vmem [thread:$0]  %s5, 1024, %s64, [#allocation9], 64, 64, 4
    $region25: #{tpu_custom_call.1} parent=1 // pred_fallthru
      _
    // Predicated region
    $region26: #{tpu_custom_call.1} parent=1 // pred_check
      _
    $region27: #{tpu_custom_call.1} parent=1 // pred_check_branch
      %71 = sbr.rel (0) target = $region29
    $region28: #{tpu_custom_call.1} parent=1 // pred_region
      _
    $region29: #{tpu_custom_call.1} parent=1 // pred_fallthru
      _
    // Predicated region
    $region30: #{tpu_custom_call.1} parent=1 // pred_check
      _
    $region31: #{tpu_custom_call.1} parent=1 // pred_check_branch
      %73 = sbr.rel (0) target = $region33
    $region32: #{tpu_custom_call.1} parent=1 // pred_region
      %s75 = ssub.s32 1024, 1024
      %76 = vsyncadd [#allocation9], %s75
      %s77 = sshll.u32 [#allocation10], 4
      %s78 = int_to_ptr.vmem [resolvable:$true] %s77
      %83 = dma.hbm_to_vmem [thread:$0]  %s7, 1024, %s78, [#allocation9], 64, 64, 4
    $region33: #{tpu_custom_call.1} parent=1 // pred_fallthru
      _
    // Predicated region
    $region34: #{tpu_custom_call.1} parent=1 // pred_check
      _
    $region35: #{tpu_custom_call.1} parent=1 // pred_check_branch
      %85 = sbr.rel (0) target = $region37
    $region36: #{tpu_custom_call.1} parent=1 // pred_region
      _
    $region37: #{tpu_custom_call.1} parent=1 // pred_fallthru
      _
    // Predicated region
    $region38: #{tpu_custom_call.1} parent=1 // pred_check
      _
    $region39: #{tpu_custom_call.1} parent=1 // pred_check_branch
      %87 = sbr.rel (0) target = $region41
    $region40: #{tpu_custom_call.1} parent=1 // pred_region
      %88 = dma.done [#allocation3], 128
    $region41: #{tpu_custom_call.1} parent=1 // pred_fallthru
      _
    // Predicated region
    $region42: #{tpu_custom_call.1} parent=1 // pred_check
      _
    $region43: #{tpu_custom_call.1} parent=1 // pred_check_branch
      %90 = sbr.rel (0) target = $region45
    $region44: #{tpu_custom_call.1} parent=1 // pred_region
      %91 = dma.done [#allocation6], 1024
    $region45: #{tpu_custom_call.1} parent=1 // pred_fallthru
      _
    // Predicated region
    $region46: #{tpu_custom_call.1} parent=1 // pred_check
      _
    $region47: #{tpu_custom_call.1} parent=1 // pred_check_branch
      %93 = sbr.rel (0) target = $region49
    $region48: #{tpu_custom_call.1} parent=1 // pred_region
      %94 = dma.done [#allocation6], 1024
    $region49: #{tpu_custom_call.1} parent=1 // pred_fallthru
      _
    // Predicated region
    $region50: #{tpu_custom_call.1} parent=1 // pred_check
      _
    $region51: #{tpu_custom_call.1} parent=1 // pred_check_branch
      %96 = sbr.rel (0) target = $region53
    $region52: #{tpu_custom_call.1} parent=1 // pred_region
      %97 = dma.done [#allocation9], 1024
    $region53: #{tpu_custom_call.1} parent=1 // pred_fallthru
      _
    // Predicated region
    $region54: #{tpu_custom_call.1} parent=1 // pred_check
      _
    $region55: #{tpu_custom_call.1} parent=1 // pred_check_branch
      %99 = sbr.rel (0) target = $region57
    $region56: #{tpu_custom_call.1} parent=1 // pred_region
      %100 = dma.done [#allocation9], 1024
    $region57: #{tpu_custom_call.1} parent=1 // pred_fallthru
      _
    %v102 = vld [vmem:[#allocation2] sm:$0xf]
    %v103 = vld [vmem:[#allocation2 + $0x4] sm:$0xf]
    %v104 = vld [vmem:[#allocation5] sm:$0xf]
    %v105 = vld [vmem:[#allocation5 + $0x4] sm:$0xf]
    %v106 = vld [vmem:[#allocation5 + $0x8] sm:$0xf]
    %v107 = vld [vmem:[#allocation5 + $0xc] sm:$0xf]
    %v108 = vld [vmem:[#allocation5 + $0x10] sm:$0xf]
    %v109 = vld [vmem:[#allocation5 + $0x14] sm:$0xf]
    %v110 = vld [vmem:[#allocation5 + $0x18] sm:$0xf]
    %v111 = vld [vmem:[#allocation5 + $0x1c] sm:$0xf]
    %v112 = vld [vmem:[#allocation5 + $0x20] sm:$0xf]
    %v113 = vld [vmem:[#allocation5 + $0x24] sm:$0xf]
    %v114 = vld [vmem:[#allocation5 + $0x28] sm:$0xf]
    %v115 = vld [vmem:[#allocation5 + $0x2c] sm:$0xf]
    %v116 = vld [vmem:[#allocation5 + $0x30] sm:$0xf]
    %v117 = vld [vmem:[#allocation5 + $0x34] sm:$0xf]
    %v118 = vld [vmem:[#allocation5 + $0x38] sm:$0xf]
    %v119 = vld [vmem:[#allocation5 + $0x3c] sm:$0xf]
    %v120 = vld [vmem:[%s2] sm:$0x1]
    %v122 = vlaneseq
    %v123 = vshrl.u32 %v122, 7
    %v124 = vsub.s32 0, %v123
    %v125 = vrot.slane %v120, %v124
    %v129 = vunpack.c.l.b16 %v102
    %v130 = vunpack.c.l.b16 %v103
    %v131 = vpack.c.b16 %v130, %v129
    %v149 = vunpack.c.l.b16 %v104
    %v150 = vunpack.c.l.b16 %v105
    %v151 = vunpack.c.l.b16 %v106
    %v152 = vunpack.c.l.b16 %v107
    %v153 = vunpack.c.l.b16 %v108
    %v154 = vunpack.c.l.b16 %v109
    %v155 = vunpack.c.l.b16 %v110
    %v156 = vunpack.c.l.b16 %v111
    %v157 = vunpack.c.l.b16 %v112
    %v158 = vunpack.c.l.b16 %v113
    %v159 = vunpack.c.l.b16 %v114
    %v160 = vunpack.c.l.b16 %v115
    %v161 = vunpack.c.l.b16 %v116
    %v162 = vunpack.c.l.b16 %v117
    %v163 = vunpack.c.l.b16 %v118
    %v164 = vunpack.c.l.b16 %v119
    %v165 = vpack.c.b16 %v150, %v149
    %v166 = vpack.c.b16 %v152, %v151
    %v167 = vpack.c.b16 %v154, %v153
    %v168 = vpack.c.b16 %v156, %v155
    %v169 = vpack.c.b16 %v158, %v157
    %v170 = vpack.c.b16 %v160, %v159
    %v171 = vpack.c.b16 %v162, %v161
    %v172 = vpack.c.b16 %v164, %v163
    %181 = vmatprep.subr.bf16.mxu0 0
    %182 = vmatpush1.bf16.msra.mxu0 %v165
    %183 = vmatprep.subr.bf16.mxu0 0
    %184 = vmatpush1.bf16.msra.mxu0 %v166
    %185 = vmatprep.subr.bf16.mxu0 0
    %186 = vmatpush1.bf16.msra.mxu0 %v167
    %187 = vmatprep.subr.bf16.mxu0 0
    %188 = vmatpush1.bf16.msra.mxu0 %v168
    %189 = vmatprep.subr.bf16.mxu0 0
    %190 = vmatpush1.bf16.msra.mxu0 %v169
    %191 = vmatprep.subr.bf16.mxu0 0
    %192 = vmatpush1.bf16.msra.mxu0 %v170
    %193 = vmatprep.subr.bf16.mxu0 0
    %194 = vmatpush1.bf16.msra.mxu0 %v171
    %195 = vmatprep.subr.bf16.mxu0 0
    %196 = vmatpush1.bf16.msra.mxu0 %v172
    %197 = vmatprep.subr.bf16.mxu0 0
    %198 = vmatpush1.bf16.msra.mxu0 0
    %199 = vmatprep.subr.bf16.mxu0 0
    %200 = vmatpush1.bf16.msra.mxu0 0
    %201 = vmatprep.subr.bf16.mxu0 0
    %202 = vmatpush1.bf16.msra.mxu0 0
    %203 = vmatprep.subr.bf16.mxu0 0
    %204 = vmatpush1.bf16.msra.mxu0 0
    %205 = vmatprep.subr.bf16.mxu0 0
    %206 = vmatpush1.bf16.msra.mxu0 0
    %207 = vmatprep.subr.bf16.mxu0 0
    %208 = vmatpush1.bf16.msra.mxu0 0
    %209 = vmatprep.subr.bf16.mxu0 0
    %210 = vmatpush1.bf16.msra.mxu0 0
    %211 = vmatprep.subr.bf16.mxu0 0
    %212 = vmatpush1.bf16.msra.mxu0 0
    %213 = vmatprep.mubr.bf16.mxu0 0
    %214 = vmatmul.mubr.bf16.gmra.mrb[0].mxu0 %v131
    %v215 = vpop.f32.mrb[0].mxu0
    %v216 = vadd.f32 %v125, %v215
    %v217 = vpop.f32.mrb[0].mxu0
    %v218 = vpop.f32.mrb[0].mxu0
    %v219 = vadd.f32 %v125, %v218
    %v220 = vpop.f32.mrb[0].mxu0
    %221 = vdwg.mxu0
    %v222 = vmul.f32 %v216, 0.2
    %v223 = vmul.f32 %v219, 0.2
    %v224 = vmax.f32 %v216, %v222
    %v225 = vmax.f32 %v219, %v223
    %v226 = vpack.c.bf16 %v225, %v224
    %v227 = vld [vmem:[#allocation7] sm:$0xf]
    %v228 = vld [vmem:[#allocation7 + $0x4] sm:$0xf]
    %v229 = vld [vmem:[#allocation7 + $0x8] sm:$0xf]
    %v230 = vld [vmem:[#allocation7 + $0xc] sm:$0xf]
    %v231 = vld [vmem:[#allocation7 + $0x10] sm:$0xf]
    %v232 = vld [vmem:[#allocation7 + $0x14] sm:$0xf]
    %v233 = vld [vmem:[#allocation7 + $0x18] sm:$0xf]
    %v234 = vld [vmem:[#allocation7 + $0x1c] sm:$0xf]
    %v235 = vld [vmem:[#allocation7 + $0x20] sm:$0xf]
    %v236 = vld [vmem:[#allocation7 + $0x24] sm:$0xf]
    %v237 = vld [vmem:[#allocation7 + $0x28] sm:$0xf]
    %v238 = vld [vmem:[#allocation7 + $0x2c] sm:$0xf]
    %v239 = vld [vmem:[#allocation7 + $0x30] sm:$0xf]
    %v240 = vld [vmem:[#allocation7 + $0x34] sm:$0xf]
    %v241 = vld [vmem:[#allocation7 + $0x38] sm:$0xf]
    %v242 = vld [vmem:[#allocation7 + $0x3c] sm:$0xf]
    %v243 = vld [vmem:[%s4] sm:$0x1]
    %v245 = vlaneseq
    %v246 = vshrl.u32 %v245, 7
    %v247 = vsub.s32 0, %v246
    %v248 = vrot.slane %v243, %v247
    %v266 = vunpack.c.l.b16 %v227
    %v267 = vunpack.c.l.b16 %v228
    %v268 = vunpack.c.l.b16 %v229
    %v269 = vunpack.c.l.b16 %v230
    %v270 = vunpack.c.l.b16 %v231
    %v271 = vunpack.c.l.b16 %v232
    %v272 = vunpack.c.l.b16 %v233
    %v273 = vunpack.c.l.b16 %v234
    %v274 = vunpack.c.l.b16 %v235
    %v275 = vunpack.c.l.b16 %v236
    %v276 = vunpack.c.l.b16 %v237
    %v277 = vunpack.c.l.b16 %v238
    %v278 = vunpack.c.l.b16 %v239
    %v279 = vunpack.c.l.b16 %v240
    %v280 = vunpack.c.l.b16 %v241
    %v281 = vunpack.c.l.b16 %v242
    %v282 = vpack.c.b16 %v267, %v266
    %v283 = vpack.c.b16 %v269, %v268
    %v284 = vpack.c.b16 %v271, %v270
    %v285 = vpack.c.b16 %v273, %v272
    %v286 = vpack.c.b16 %v275, %v274
    %v287 = vpack.c.b16 %v277, %v276
    %v288 = vpack.c.b16 %v279, %v278
    %v289 = vpack.c.b16 %v281, %v280
    %298 = vmatprep.subr.bf16.mxu0 0
    %299 = vmatpush1.bf16.msra.mxu0 %v282
    %300 = vmatprep.subr.bf16.mxu0 0
    %301 = vmatpush1.bf16.msra.mxu0 %v283
    %302 = vmatprep.subr.bf16.mxu0 0
    %303 = vmatpush1.bf16.msra.mxu0 %v284
    %304 = vmatprep.subr.bf16.mxu0 0
    %305 = vmatpush1.bf16.msra.mxu0 %v285
    %306 = vmatprep.subr.bf16.mxu0 0
    %307 = vmatpush1.bf16.msra.mxu0 %v286
    %308 = vmatprep.subr.bf16.mxu0 0
    %309 = vmatpush1.bf16.msra.mxu0 %v287
    %310 = vmatprep.subr.bf16.mxu0 0
    %311 = vmatpush1.bf16.msra.mxu0 %v288
    %312 = vmatprep.subr.bf16.mxu0 0
    %313 = vmatpush1.bf16.msra.mxu0 %v289
    %314 = vmatprep.subr.bf16.mxu0 0
    %315 = vmatpush1.bf16.msra.mxu0 0
    %316 = vmatprep.subr.bf16.mxu0 0
    %317 = vmatpush1.bf16.msra.mxu0 0
    %318 = vmatprep.subr.bf16.mxu0 0
    %319 = vmatpush1.bf16.msra.mxu0 0
    %320 = vmatprep.subr.bf16.mxu0 0
    %321 = vmatpush1.bf16.msra.mxu0 0
    %322 = vmatprep.subr.bf16.mxu0 0
    %323 = vmatpush1.bf16.msra.mxu0 0
    %324 = vmatprep.subr.bf16.mxu0 0
    %325 = vmatpush1.bf16.msra.mxu0 0
    %326 = vmatprep.subr.bf16.mxu0 0
    %327 = vmatpush1.bf16.msra.mxu0 0
    %328 = vmatprep.subr.bf16.mxu0 0
    %329 = vmatpush1.bf16.msra.mxu0 0
    %330 = vmatprep.mubr.bf16.mxu0 0
    %331 = vmatmul.mubr.bf16.gmra.mrb[0].mxu0 %v226
    %v332 = vpop.f32.mrb[0].mxu0
    %v333 = vadd.f32 %v248, %v332
    %v334 = vpop.f32.mrb[0].mxu0
    %v335 = vpop.f32.mrb[0].mxu0
    %v336 = vadd.f32 %v248, %v335
    %v337 = vpop.f32.mrb[0].mxu0
    %338 = vdwg.mxu0
    %v339 = vmul.f32 %v333, 0.2
    %v340 = vmul.f32 %v336, 0.2
    %v341 = vmax.f32 %v333, %v339
    %v342 = vmax.f32 %v336, %v340
    %v343 = vpack.c.bf16 %v342, %v341
    %v344 = vld [vmem:[#allocation8] sm:$0xf]
    %v345 = vld [vmem:[#allocation8 + $0x4] sm:$0xf]
    %v346 = vld [vmem:[#allocation8 + $0x8] sm:$0xf]
    %v347 = vld [vmem:[#allocation8 + $0xc] sm:$0xf]
    %v348 = vld [vmem:[#allocation8 + $0x10] sm:$0xf]
    %v349 = vld [vmem:[#allocation8 + $0x14] sm:$0xf]
    %v350 = vld [vmem:[#allocation8 + $0x18] sm:$0xf]
    %v351 = vld [vmem:[#allocation8 + $0x1c] sm:$0xf]
    %v352 = vld [vmem:[#allocation8 + $0x20] sm:$0xf]
    %v353 = vld [vmem:[#allocation8 + $0x24] sm:$0xf]
    %v354 = vld [vmem:[#allocation8 + $0x28] sm:$0xf]
    %v355 = vld [vmem:[#allocation8 + $0x2c] sm:$0xf]
    %v356 = vld [vmem:[#allocation8 + $0x30] sm:$0xf]
    %v357 = vld [vmem:[#allocation8 + $0x34] sm:$0xf]
    %v358 = vld [vmem:[#allocation8 + $0x38] sm:$0xf]
    %v359 = vld [vmem:[#allocation8 + $0x3c] sm:$0xf]
    %v360 = vld [vmem:[%s6] sm:$0x1]
    %v362 = vlaneseq
    %v363 = vshrl.u32 %v362, 7
    %v364 = vsub.s32 0, %v363
    %v365 = vrot.slane %v360, %v364
    %v383 = vunpack.c.l.b16 %v344
    %v384 = vunpack.c.l.b16 %v345
    %v385 = vunpack.c.l.b16 %v346
    %v386 = vunpack.c.l.b16 %v347
    %v387 = vunpack.c.l.b16 %v348
    %v388 = vunpack.c.l.b16 %v349
    %v389 = vunpack.c.l.b16 %v350
    %v390 = vunpack.c.l.b16 %v351
    %v391 = vunpack.c.l.b16 %v352
    %v392 = vunpack.c.l.b16 %v353
    %v393 = vunpack.c.l.b16 %v354
    %v394 = vunpack.c.l.b16 %v355
    %v395 = vunpack.c.l.b16 %v356
    %v396 = vunpack.c.l.b16 %v357
    %v397 = vunpack.c.l.b16 %v358
    %v398 = vunpack.c.l.b16 %v359
    %v399 = vpack.c.b16 %v384, %v383
    %v400 = vpack.c.b16 %v386, %v385
    %v401 = vpack.c.b16 %v388, %v387
    %v402 = vpack.c.b16 %v390, %v389
    %v403 = vpack.c.b16 %v392, %v391
    %v404 = vpack.c.b16 %v394, %v393
    %v405 = vpack.c.b16 %v396, %v395
    %v406 = vpack.c.b16 %v398, %v397
    %415 = vmatprep.subr.bf16.mxu0 0
    %416 = vmatpush1.bf16.msra.mxu0 %v399
    %417 = vmatprep.subr.bf16.mxu0 0
    %418 = vmatpush1.bf16.msra.mxu0 %v400
    %419 = vmatprep.subr.bf16.mxu0 0
    %420 = vmatpush1.bf16.msra.mxu0 %v401
    %421 = vmatprep.subr.bf16.mxu0 0
    %422 = vmatpush1.bf16.msra.mxu0 %v402
    %423 = vmatprep.subr.bf16.mxu0 0
    %424 = vmatpush1.bf16.msra.mxu0 %v403
    %425 = vmatprep.subr.bf16.mxu0 0
    %426 = vmatpush1.bf16.msra.mxu0 %v404
    %427 = vmatprep.subr.bf16.mxu0 0
    %428 = vmatpush1.bf16.msra.mxu0 %v405
    %429 = vmatprep.subr.bf16.mxu0 0
    %430 = vmatpush1.bf16.msra.mxu0 %v406
    %431 = vmatprep.subr.bf16.mxu0 0
    %432 = vmatpush1.bf16.msra.mxu0 0
    %433 = vmatprep.subr.bf16.mxu0 0
    %434 = vmatpush1.bf16.msra.mxu0 0
    %435 = vmatprep.subr.bf16.mxu0 0
    %436 = vmatpush1.bf16.msra.mxu0 0
    %437 = vmatprep.subr.bf16.mxu0 0
    %438 = vmatpush1.bf16.msra.mxu0 0
    %439 = vmatprep.subr.bf16.mxu0 0
    %440 = vmatpush1.bf16.msra.mxu0 0
    %441 = vmatprep.subr.bf16.mxu0 0
    %442 = vmatpush1.bf16.msra.mxu0 0
    %443 = vmatprep.subr.bf16.mxu0 0
    %444 = vmatpush1.bf16.msra.mxu0 0
    %445 = vmatprep.subr.bf16.mxu0 0
    %446 = vmatpush1.bf16.msra.mxu0 0
    %447 = vmatprep.mubr.bf16.mxu0 0
    %448 = vmatmul.mubr.bf16.gmra.mrb[0].mxu0 %v343
    %v449 = vpop.f32.mrb[0].mxu0
    %v450 = vadd.f32 %v365, %v449
    %v451 = vpop.f32.mrb[0].mxu0
    %v452 = vpop.f32.mrb[0].mxu0
    %v453 = vadd.f32 %v365, %v452
    %v454 = vpop.f32.mrb[0].mxu0
    %455 = vdwg.mxu0
    %v456 = vmul.f32 %v450, 0.2
    %v457 = vmul.f32 %v453, 0.2
    %v458 = vmax.f32 %v450, %v456
    %v459 = vmax.f32 %v453, %v457
    %v460 = vpack.c.bf16 %v459, %v458
    %v461 = vld [vmem:[#allocation10] sm:$0xf]
    %v462 = vld [vmem:[#allocation10 + $0x4] sm:$0xf]
    %v463 = vld [vmem:[#allocation10 + $0x8] sm:$0xf]
    %v464 = vld [vmem:[#allocation10 + $0xc] sm:$0xf]
    %v465 = vld [vmem:[#allocation10 + $0x10] sm:$0xf]
    %v466 = vld [vmem:[#allocation10 + $0x14] sm:$0xf]
    %v467 = vld [vmem:[#allocation10 + $0x18] sm:$0xf]
    %v468 = vld [vmem:[#allocation10 + $0x1c] sm:$0xf]
    %v469 = vld [vmem:[#allocation10 + $0x20] sm:$0xf]
    %v470 = vld [vmem:[#allocation10 + $0x24] sm:$0xf]
    %v471 = vld [vmem:[#allocation10 + $0x28] sm:$0xf]
    %v472 = vld [vmem:[#allocation10 + $0x2c] sm:$0xf]
    %v473 = vld [vmem:[#allocation10 + $0x30] sm:$0xf]
    %v474 = vld [vmem:[#allocation10 + $0x34] sm:$0xf]
    %v475 = vld [vmem:[#allocation10 + $0x38] sm:$0xf]
    %v476 = vld [vmem:[#allocation10 + $0x3c] sm:$0xf]
    %v477 = vld [vmem:[%s8] sm:$0x1]
    %v479 = vlaneseq
    %v480 = vshrl.u32 %v479, 7
    %v481 = vsub.s32 0, %v480
    %v482 = vrot.slane %v477, %v481
    %v500 = vunpack.c.l.b16 %v461
    %v501 = vunpack.c.l.b16 %v462
    %v502 = vunpack.c.l.b16 %v463
    %v503 = vunpack.c.l.b16 %v464
    %v504 = vunpack.c.l.b16 %v465
    %v505 = vunpack.c.l.b16 %v466
    %v506 = vunpack.c.l.b16 %v467
    %v507 = vunpack.c.l.b16 %v468
    %v508 = vunpack.c.l.b16 %v469
    %v509 = vunpack.c.l.b16 %v470
    %v510 = vunpack.c.l.b16 %v471
    %v511 = vunpack.c.l.b16 %v472
    %v512 = vunpack.c.l.b16 %v473
    %v513 = vunpack.c.l.b16 %v474
    %v514 = vunpack.c.l.b16 %v475
    %v515 = vunpack.c.l.b16 %v476
    %v516 = vpack.c.b16 %v501, %v500
    %v517 = vpack.c.b16 %v503, %v502
    %v518 = vpack.c.b16 %v505, %v504
    %v519 = vpack.c.b16 %v507, %v506
    %v520 = vpack.c.b16 %v509, %v508
    %v521 = vpack.c.b16 %v511, %v510
    %v522 = vpack.c.b16 %v513, %v512
    %v523 = vpack.c.b16 %v515, %v514
    %532 = vmatprep.subr.bf16.mxu0 0
    %533 = vmatpush1.bf16.msra.mxu0 %v516
    %534 = vmatprep.subr.bf16.mxu0 0
    %535 = vmatpush1.bf16.msra.mxu0 %v517
    %536 = vmatprep.subr.bf16.mxu0 0
    %537 = vmatpush1.bf16.msra.mxu0 %v518
    %538 = vmatprep.subr.bf16.mxu0 0
    %539 = vmatpush1.bf16.msra.mxu0 %v519
    %540 = vmatprep.subr.bf16.mxu0 0
    %541 = vmatpush1.bf16.msra.mxu0 %v520
    %542 = vmatprep.subr.bf16.mxu0 0
    %543 = vmatpush1.bf16.msra.mxu0 %v521
    %544 = vmatprep.subr.bf16.mxu0 0
    %545 = vmatpush1.bf16.msra.mxu0 %v522
    %546 = vmatprep.subr.bf16.mxu0 0
    %547 = vmatpush1.bf16.msra.mxu0 %v523
    %548 = vmatprep.subr.bf16.mxu0 0
    %549 = vmatpush1.bf16.msra.mxu0 0
    %550 = vmatprep.subr.bf16.mxu0 0
    %551 = vmatpush1.bf16.msra.mxu0 0
    %552 = vmatprep.subr.bf16.mxu0 0
    %553 = vmatpush1.bf16.msra.mxu0 0
    %554 = vmatprep.subr.bf16.mxu0 0
    %555 = vmatpush1.bf16.msra.mxu0 0
    %556 = vmatprep.subr.bf16.mxu0 0
    %557 = vmatpush1.bf16.msra.mxu0 0
    %558 = vmatprep.subr.bf16.mxu0 0
    %559 = vmatpush1.bf16.msra.mxu0 0
    %560 = vmatprep.subr.bf16.mxu0 0
    %561 = vmatpush1.bf16.msra.mxu0 0
    %562 = vmatprep.subr.bf16.mxu0 0
    %563 = vmatpush1.bf16.msra.mxu0 0
    %564 = vmatprep.mubr.bf16.mxu0 0
    %565 = vmatmul.mubr.bf16.gmra.mrb[0].mxu0 %v460
    %v566 = vpop.f32.mrb[0].mxu0
    %v567 = vadd.f32 %v482, %v566
    %v568 = vpop.f32.mrb[0].mxu0
    %v569 = vpop.f32.mrb[0].mxu0
    %v570 = vadd.f32 %v482, %v569
    %v571 = vpop.f32.mrb[0].mxu0
    %572 = vdwg.mxu0
    %v573 = vmul.f32 %v567, 0.2
    %v574 = vmul.f32 %v570, 0.2
    %v575 = vmax.f32 %v567, %v573
    %v576 = vmax.f32 %v570, %v574
    %577 = vst [vmem:[#allocation11] sm:$0xff] %v575
    %578 = vst [vmem:[#allocation11 + $0x8] sm:$0xff] %v576
    // Predicated region
    $region58: #{tpu_custom_call.1} parent=1 // pred_check
      _
    $region59: #{tpu_custom_call.1} parent=1 // pred_check_branch
      %580 = sbr.rel (0) target = $region61
    $region60: #{tpu_custom_call.1} parent=1 // pred_region
      %s582 = ssub.s32 256, 256
      %583 = vsyncadd [#allocation4], %s582
      %s584 = sshll.u32 [#allocation11], 4
      %s585 = int_to_ptr.vmem [resolvable:$true] %s584
      %590 = dma.vmem_to_hbm [thread:$0]  %s585, 256, %s9, [#allocation4], 128, 128, 8
    $region61: #{tpu_custom_call.1} parent=1 // pred_fallthru
      _
    // Predicated region
    $region62: #{tpu_custom_call.1} parent=1 // pred_check
      _
    $region63: #{tpu_custom_call.1} parent=1 // pred_check_branch
      %592 = sbr.rel (0) target = $region65
    $region64: #{tpu_custom_call.1} parent=1 // pred_region
      %593 = dma.done [#allocation4], 256
    $region65: #{tpu_custom_call.1} parent=1 // pred_fallthru
      _
    %594 = vsyncpa [#allocation3], 1
    %595 = vsyncpa [#allocation6], 1
    %596 = vsyncpa [#allocation9], 1
    %597 = vsyncpa [#allocation4], 1

</llo_original>
